<compile_context>
chip_gen: v7x
topology: tpu7x:2x2x1
jax: 0.10.0
libtpu: 0.0.40
codegen_flags: <defaults>
</compile_context>

<pallas_src>
import functools

import jax
import jax.numpy as jnp
from jax.experimental import pallas as pl
from jax.experimental.pallas import tpu as pltpu


# ----------------------------------------------------------------------------
# Pallas kernel: per-row "prediction is NOT the no-object class" indicator.
# One grid step handles a (TM, C) logits tile and writes (TM, 1) float32
# indicators (1.0 if argmax != C-1, else 0.0; 0.0 for rows beyond n_rows).
# ----------------------------------------------------------------------------
def _not_noobj_kernel(x_ref, out_ref, *, n_rows, last_idx):
    x = x_ref[...].astype(jnp.float32)                       # (TM, C), cast in-kernel
    tm, _ = x.shape

    lane = jax.lax.broadcasted_iota(jnp.int32, x.shape, 1)   # class index per lane
    # last ("no-object") class logit, picked without a gather
    last = jnp.sum(jnp.where(lane == last_idx, x, 0.0), axis=-1, keepdims=True)   # (TM,1)
    # max over the real classes [0, C-2]
    max_rest = jnp.max(jnp.where(lane < last_idx, x, -jnp.inf),
                       axis=-1, keepdims=True)                                     # (TM,1)

    # argmax(-1) != C-1  <=>  max(logits[:C-1]) >= logits[C-1]  (first-max tie rule)
    indicator = (max_rest >= last).astype(jnp.float32)                              # (TM,1)

    # mask rows beyond the true row count (partial last block reads garbage)
    row = jax.lax.broadcasted_iota(jnp.int32, (tm, 1), 0) + pl.program_id(0) * tm
    out_ref[...] = jnp.where(row < n_rows, indicator, 0.0)


def _round_up(x, m):
    return ((x + m - 1) // m) * m


def _choose_tm(n_rows, n_cls, itemsize, target_bytes=2 << 20, tm_max=2048):
    """Rows per block: ~2 MiB per input buffer, sublane-aligned, <= array rows."""
    sub = 8 * max(1, 4 // itemsize)            # sublane packing: f32->8, bf16->16, int8->32
    tm = target_bytes // max(1, n_cls * itemsize)
    tm = max(sub, min(tm_max, tm))
    tm = max(sub, (tm // sub) * sub)
    tm = min(tm, _round_up(n_rows, sub))       # tiny inputs -> a single (near-)exact block
    return tm


def _not_noobj_per_row(logits):
    """logits: (N, C), any float dtype. Returns (N,) float32 indicators."""
    n, c = logits.shape
    tm = _choose_tm(n, c, logits.dtype.itemsize)
    num_blocks = pl.cdiv(n, tm)
    n_pad = num_blocks * tm

    per_row = pl.pallas_call(
        functools.partial(_not_noobj_kernel, n_rows=n, last_idx=c - 1),
        out_shape=jax.ShapeDtypeStruct((n_pad, 1), jnp.float32),
        grid=(num_blocks,),
        in_specs=[pl.BlockSpec((tm, c), lambda i: (i, 0))],     # logits tile (no pad copy)
        out_specs=pl.BlockSpec((tm, 1), lambda i: (i, 0)),
        compiler_params=pltpu.CompilerParams(
            dimension_semantics=("parallel",)),
    )(logits)
    return per_row[:n, 0]


# ----------------------------------------------------------------------------
# CardinalityLoss forward
# ----------------------------------------------------------------------------
def cardinality_loss(predict, target, loss_weight=1.0):
    """predict: (B, Q, C) float logits (f32 or bf16, passed through at native dtype).
    target: list of per-image GT box arrays (only len() is used), or an array of counts.
    """
    b, q, c = predict.shape
    logits = predict.reshape(b * q, c)          # metadata-only reshape, no copy, no cast

    per_row = _not_noobj_per_row(logits)        # (B*Q,) float32 indicators
    pred_counts = per_row.reshape(b, q).sum(axis=1)            # (B,) float

    if isinstance(target, (list, tuple)):
        # matches torch: [len(gt_bb) for gt_bb in target]  (Python-side metadata)
        tgt_counts = jnp.asarray([int(t.shape[0]) for t in target], dtype=jnp.float32)
    else:
        tgt_counts = jnp.asarray(target, dtype=jnp.float32)

    # F.l1_loss(reduction='mean') on B scalars — trivial, kept in plain JAX.
    loss = jnp.mean(jnp.abs(pred_counts - tgt_counts)) * loss_weight
    return {'cardinality_loss': loss}


# ----------------------------------------------------------------------------
# Pure-JAX reference for a sanity check
# ----------------------------------------------------------------------------
def _ref_cardinality_loss(predict, target, loss_weight=1.0):
    pred = (jnp.argmax(predict, axis=-1) != predict.shape[-1] - 1).sum(axis=1)
    tgt = jnp.asarray([int(t.shape[0]) for t in target], dtype=jnp.float32)
    return jnp.mean(jnp.abs(pred.astype(jnp.float32) - tgt)) * loss_weight


if __name__ == "__main__":
    key = jax.random.PRNGKey(0)
    k1, k2 = jax.random.split(key)

    # case 1: DETR-ish small shapes, f32, rows exactly tile the block
    B, Q, C = 2, 64, 92
    predict = jax.random.normal(k1, (B, Q, C), dtype=jnp.float32)
    target = [jnp.zeros((3, 4), dtype=jnp.float32),     # 3 GT boxes
              jnp.zeros((7, 4), dtype=jnp.float32)]     # 7 GT boxes

    out = cardinality_loss(predict, target, loss_weight=1.0)
    jax.block_until_ready(out)
    ref = _ref_cardinality_loss(predict, target, loss_weight=1.0)
    assert jnp.allclose(out['cardinality_loss'], ref, rtol=1e-6, atol=1e-6)

    # case 2: bf16 logits, row count that does not divide the block (partial-block mask path)
    B2, Q2, C2 = 3, 50, 33
    predict2 = jax.random.normal(k2, (B2, Q2, C2), dtype=jnp.float32).astype(jnp.bfloat16)
    target2 = [jnp.zeros((1, 4)), jnp.zeros((0, 4)), jnp.zeros((9, 4))]

    out2 = cardinality_loss(predict2, target2, loss_weight=2.0)
    jax.block_until_ready(out2)
    ref2 = _ref_cardinality_loss(predict2, target2, loss_weight=2.0)
    assert jnp.allclose(out2['cardinality_loss'], ref2, rtol=1e-5, atol=1e-5)

    print("KERNEL_OK")
</pallas_src>

<mosaic_0001>
module attributes {stable_mosaic.version = 11 : i64} {
  func.func @_not_noobj_kernel(%arg0: i32, %arg1: memref<128x92xf32, #tpu.memory_space<vmem>>, %arg2: memref<128x1xf32, #tpu.memory_space<vmem>>) attributes {dimension_semantics = [#tpu.dimension_semantics<parallel>], iteration_bounds = array<i64: 1>, scalar_prefetch = 0 : i64, scratch_operands = 0 : i64, tpu.core_type = #tpu.core_type<tc>, window_params = [{transform_indices = @transform_0, window_bounds = array<i64: 128, 92>}, {transform_indices = @transform_1, window_bounds = array<i64: 128, 1>}]} {
    %c0 = arith.constant 0 : index
    %c0_0 = arith.constant 0 : index
    %0 = vector.load %arg1[%c0, %c0_0] : memref<128x92xf32, #tpu.memory_space<vmem>>, vector<128x92xf32>
    %1 = tpu.iota {dimensions = array<i32: 1>} : vector<128x92xi32>
    %c91_i32 = arith.constant 91 : i32
    %2 = vector.broadcast %c91_i32 : i32 to vector<128x92xi32>
    %3 = arith.cmpi eq, %1, %2 : vector<128x92xi32>
    %cst = arith.constant 0.000000e+00 : f32
    %4 = vector.broadcast %cst : f32 to vector<128x92xf32>
    %5 = arith.select %3, %0, %4 : vector<128x92xi1>, vector<128x92xf32>
    %cst_1 = arith.constant dense<0.000000e+00> : vector<128xf32>
    %6 = vector.multi_reduction <add>, %5, %cst_1 [1] : vector<128x92xf32> to vector<128xf32>
    %7 = vector.shape_cast %6 : vector<128xf32> to vector<128x1xf32>
    %c91_i32_2 = arith.constant 91 : i32
    %8 = vector.broadcast %c91_i32_2 : i32 to vector<128x92xi32>
    %9 = arith.cmpi slt, %1, %8 : vector<128x92xi32>
    %cst_3 = arith.constant 0xFF800000 : f32
    %10 = vector.broadcast %cst_3 : f32 to vector<128x92xf32>
    %11 = arith.select %9, %0, %10 : vector<128x92xi1>, vector<128x92xf32>
    %cst_4 = arith.constant dense<0xFF800000> : vector<128xf32>
    %12 = vector.multi_reduction <maximumf>, %11, %cst_4 [1] : vector<128x92xf32> to vector<128xf32>
    %13 = vector.shape_cast %12 : vector<128xf32> to vector<128x1xf32>
    %14 = arith.cmpf oge, %13, %7 : vector<128x1xf32>
    %15 = arith.extui %14 : vector<128x1xi1> to vector<128x1xi32>
    %16 = arith.sitofp %15 : vector<128x1xi32> to vector<128x1xf32>
    %17 = tpu.iota {dimensions = array<i32: 0>} : vector<128x1xi32>
    %c128_i32 = arith.constant 128 : i32
    %18 = arith.muli %arg0, %c128_i32 : i32
    %19 = vector.broadcast %18 : i32 to vector<128x1xi32>
    %20 = arith.addi %17, %19 : vector<128x1xi32>
    %c128_i32_5 = arith.constant 128 : i32
    %21 = vector.broadcast %c128_i32_5 : i32 to vector<128x1xi32>
    %22 = arith.cmpi slt, %20, %21 : vector<128x1xi32>
    %cst_6 = arith.constant 0.000000e+00 : f32
    %23 = vector.broadcast %cst_6 : f32 to vector<128x1xf32>
    %24 = arith.select %22, %16, %23 : vector<128x1xi1>, vector<128x1xf32>
    %c0_7 = arith.constant 0 : index
    %c0_8 = arith.constant 0 : index
    %25 = vector.load %arg2[%c0_7, %c0_8] : memref<128x1xf32, #tpu.memory_space<vmem>>, vector<128x1xf32>
    tpu.vector_store %arg2[%c0_7, %c0_8], %24 {strides = array<i32>} : memref<128x1xf32, #tpu.memory_space<vmem>>, vector<128x1xf32>,
    return
  }
  func.func @transform_0(%arg0: i32) -> (i32, i32) {
    %c0_i32 = arith.constant 0 : i32
    %c0_i32_0 = arith.constant 0 : i32
    return %arg0, %c0_i32 : i32, i32
  }
  func.func @transform_1(%arg0: i32) -> (i32, i32) {
    %c0_i32 = arith.constant 0 : i32
    %c0_i32_0 = arith.constant 0 : i32
    return %arg0, %c0_i32 : i32, i32
  }
}

</mosaic_0001>

<llo_original>
// kernel: tpu_custom_call.1
$region0: #{tpu_custom_call.1}
  #allocation0 [shape = 'u32[]', space=smem, size = 0x4, offset = 0x4, fixed_abs, tag = 'smem constant byte address 0x4 - core index']
  #allocation1 [shape = 'u32[144,128]{1,0:T(1,128)}', space=vmem, size = 0x12000, scoped, tag = 'internal scratch']
  %s0 = inlined_call_operand.vmem [shape: f32[128,92], index: 0, kind: input, shape index: {}]
  %s1 = inlined_call_operand.vmem [shape: f32[128,1], index: 1, kind: output, shape index: {}]
  %s2 = sld [smem:[#allocation0]]
  $region14: #{tpu_custom_call.1} parent=0
    _
  %s4 = ssub.s32 1, %s2
  %s5 = scalar_select 0, %s4, %s2
  // Predicated region
  $region2: #{tpu_custom_call.1} parent=0 // pred_check
    _
  $region3: #{tpu_custom_call.1} parent=0 // pred_check_branch
    %7 = sbr.rel (0) target = $region5
  $region4: #{tpu_custom_call.1} parent=0 // pred_region
    _
  $region5: #{tpu_custom_call.1} parent=0 // pred_fallthru
    _
  %v8 = vld [vmem:[%s0] sm:$0xff]
  %v9 = vld [vmem:[%s0 + $0x8] sm:$0xff]
  %v10 = vld [vmem:[%s0 + $0x10] sm:$0xff]
  %v11 = vld [vmem:[%s0 + $0x18] sm:$0xff]
  %v12 = vld [vmem:[%s0 + $0x20] sm:$0xff]
  %v13 = vld [vmem:[%s0 + $0x28] sm:$0xff]
  %v14 = vld [vmem:[%s0 + $0x30] sm:$0xff]
  %v15 = vld [vmem:[%s0 + $0x38] sm:$0xff]
  %v16 = vld [vmem:[%s0 + $0x40] sm:$0xff]
  %v17 = vld [vmem:[%s0 + $0x48] sm:$0xff]
  %v18 = vld [vmem:[%s0 + $0x50] sm:$0xff]
  %v19 = vld [vmem:[%s0 + $0x58] sm:$0xff]
  %v20 = vld [vmem:[%s0 + $0x60] sm:$0xff]
  %v21 = vld [vmem:[%s0 + $0x68] sm:$0xff]
  %v22 = vld [vmem:[%s0 + $0x70] sm:$0xff]
  %v23 = vld [vmem:[%s0 + $0x78] sm:$0xff]
  %v24 = vlaneseq
  %v25 = vand.u32 %v24, 127
  %vm26 = vcmp.eq.s32.totalorder %v25, 91
  %v27 = vsel %vm26, %v8, 0.0
  %v28 = vsel %vm26, %v9, 0.0
  %v29 = vsel %vm26, %v10, 0.0
  %v30 = vsel %vm26, %v11, 0.0
  %v31 = vsel %vm26, %v12, 0.0
  %v32 = vsel %vm26, %v13, 0.0
  %v33 = vsel %vm26, %v14, 0.0
  %v34 = vsel %vm26, %v15, 0.0
  %v35 = vsel %vm26, %v16, 0.0
  %v36 = vsel %vm26, %v17, 0.0
  %v37 = vsel %vm26, %v18, 0.0
  %v38 = vsel %vm26, %v19, 0.0
  %v39 = vsel %vm26, %v20, 0.0
  %v40 = vsel %vm26, %v21, 0.0
  %v41 = vsel %vm26, %v22, 0.0
  %v42 = vsel %vm26, %v23, 0.0
  %vm43 = vcmask 752640
  %v44 = vsel %vm43, %v27, 0.0
  %45 = vadd.xlane.f32.xlu0 %v44
  %v46 = vpop.xlane.xlu0 %45
  %v47 = vsel %vm43, %v28, 0.0
  %48 = vadd.xlane.f32.xlu0 %v47
  %v49 = vpop.xlane.xlu0 %48
  %v50 = vsel %vm43, %v29, 0.0
  %51 = vadd.xlane.f32.xlu0 %v50
  %v52 = vpop.xlane.xlu0 %51
  %v53 = vsel %vm43, %v30, 0.0
  %54 = vadd.xlane.f32.xlu0 %v53
  %v55 = vpop.xlane.xlu0 %54
  %v56 = vsel %vm43, %v31, 0.0
  %57 = vadd.xlane.f32.xlu0 %v56
  %v58 = vpop.xlane.xlu0 %57
  %v59 = vsel %vm43, %v32, 0.0
  %60 = vadd.xlane.f32.xlu0 %v59
  %v61 = vpop.xlane.xlu0 %60
  %v62 = vsel %vm43, %v33, 0.0
  %63 = vadd.xlane.f32.xlu0 %v62
  %v64 = vpop.xlane.xlu0 %63
  %v65 = vsel %vm43, %v34, 0.0
  %66 = vadd.xlane.f32.xlu0 %v65
  %v67 = vpop.xlane.xlu0 %66
  %v68 = vsel %vm43, %v35, 0.0
  %69 = vadd.xlane.f32.xlu0 %v68
  %v70 = vpop.xlane.xlu0 %69
  %v71 = vsel %vm43, %v36, 0.0
  %72 = vadd.xlane.f32.xlu0 %v71
  %v73 = vpop.xlane.xlu0 %72
  %v74 = vsel %vm43, %v37, 0.0
  %75 = vadd.xlane.f32.xlu0 %v74
  %v76 = vpop.xlane.xlu0 %75
  %v77 = vsel %vm43, %v38, 0.0
  %78 = vadd.xlane.f32.xlu0 %v77
  %v79 = vpop.xlane.xlu0 %78
  %v80 = vsel %vm43, %v39, 0.0
  %81 = vadd.xlane.f32.xlu0 %v80
  %v82 = vpop.xlane.xlu0 %81
  %v83 = vsel %vm43, %v40, 0.0
  %84 = vadd.xlane.f32.xlu0 %v83
  %v85 = vpop.xlane.xlu0 %84
  %v86 = vsel %vm43, %v41, 0.0
  %87 = vadd.xlane.f32.xlu0 %v86
  %v88 = vpop.xlane.xlu0 %87
  %v89 = vsel %vm43, %v42, 0.0
  %90 = vadd.xlane.f32.xlu0 %v89
  %v91 = vpop.xlane.xlu0 %90
  %vm92 = vcmp.lt.s32.totalorder %v25, 91
  %v93 = vsel %vm92, %v8, -inf
  %v94 = vsel %vm92, %v9, -inf
  %v95 = vsel %vm92, %v10, -inf
  %v96 = vsel %vm92, %v11, -inf
  %v97 = vsel %vm92, %v12, -inf
  %v98 = vsel %vm92, %v13, -inf
  %v99 = vsel %vm92, %v14, -inf
  %v100 = vsel %vm92, %v15, -inf
  %v101 = vsel %vm92, %v16, -inf
  %v102 = vsel %vm92, %v17, -inf
  %v103 = vsel %vm92, %v18, -inf
  %v104 = vsel %vm92, %v19, -inf
  %v105 = vsel %vm92, %v20, -inf
  %v106 = vsel %vm92, %v21, -inf
  %v107 = vsel %vm92, %v22, -inf
  %v108 = vsel %vm92, %v23, -inf
  %v109 = vsel %vm43, %v93, -inf
  %110 = vmax.xlane.f32.xlu0 %v109
  %v111 = vpop.xlane.xlu0 %110
  %v112 = vsel %vm43, %v94, -inf
  %113 = vmax.xlane.f32.xlu0 %v112
  %v114 = vpop.xlane.xlu0 %113
  %v115 = vsel %vm43, %v95, -inf
  %116 = vmax.xlane.f32.xlu0 %v115
  %v117 = vpop.xlane.xlu0 %116
  %v118 = vsel %vm43, %v96, -inf
  %119 = vmax.xlane.f32.xlu0 %v118
  %v120 = vpop.xlane.xlu0 %119
  %v121 = vsel %vm43, %v97, -inf
  %122 = vmax.xlane.f32.xlu0 %v121
  %v123 = vpop.xlane.xlu0 %122
  %v124 = vsel %vm43, %v98, -inf
  %125 = vmax.xlane.f32.xlu0 %v124
  %v126 = vpop.xlane.xlu0 %125
  %v127 = vsel %vm43, %v99, -inf
  %128 = vmax.xlane.f32.xlu0 %v127
  %v129 = vpop.xlane.xlu0 %128
  %v130 = vsel %vm43, %v100, -inf
  %131 = vmax.xlane.f32.xlu0 %v130
  %v132 = vpop.xlane.xlu0 %131
  %v133 = vsel %vm43, %v101, -inf
  %134 = vmax.xlane.f32.xlu0 %v133
  %v135 = vpop.xlane.xlu0 %134
  %v136 = vsel %vm43, %v102, -inf
  %137 = vmax.xlane.f32.xlu0 %v136
  %v138 = vpop.xlane.xlu0 %137
  %v139 = vsel %vm43, %v103, -inf
  %140 = vmax.xlane.f32.xlu0 %v139
  %v141 = vpop.xlane.xlu0 %140
  %v142 = vsel %vm43, %v104, -inf
  %143 = vmax.xlane.f32.xlu0 %v142
  %v144 = vpop.xlane.xlu0 %143
  %v145 = vsel %vm43, %v105, -inf
  %146 = vmax.xlane.f32.xlu0 %v145
  %v147 = vpop.xlane.xlu0 %146
  %v148 = vsel %vm43, %v106, -inf
  %149 = vmax.xlane.f32.xlu0 %v148
  %v150 = vpop.xlane.xlu0 %149
  %v151 = vsel %vm43, %v107, -inf
  %152 = vmax.xlane.f32.xlu0 %v151
  %v153 = vpop.xlane.xlu0 %152
  %v154 = vsel %vm43, %v108, -inf
  %155 = vmax.xlane.f32.xlu0 %v154
  %v156 = vpop.xlane.xlu0 %155
  %vm157 = vcmp.ge.f32.partialorder %v111, %v46
  %vm158 = vcmp.ge.f32.partialorder %v114, %v49
  %vm159 = vcmp.ge.f32.partialorder %v117, %v52
  %vm160 = vcmp.ge.f32.partialorder %v120, %v55
  %vm161 = vcmp.ge.f32.partialorder %v123, %v58
  %vm162 = vcmp.ge.f32.partialorder %v126, %v61
  %vm163 = vcmp.ge.f32.partialorder %v129, %v64
  %vm164 = vcmp.ge.f32.partialorder %v132, %v67
  %vm165 = vcmp.ge.f32.partialorder %v135, %v70
  %vm166 = vcmp.ge.f32.partialorder %v138, %v73
  %vm167 = vcmp.ge.f32.partialorder %v141, %v76
  %vm168 = vcmp.ge.f32.partialorder %v144, %v79
  %vm169 = vcmp.ge.f32.partialorder %v147, %v82
  %vm170 = vcmp.ge.f32.partialorder %v150, %v85
  %vm171 = vcmp.ge.f32.partialorder %v153, %v88
  %vm172 = vcmp.ge.f32.partialorder %v156, %v91
  %v173 = vsel %vm157, 1, 0
  %v174 = vsel %vm158, 1, 0
  %v175 = vsel %vm159, 1, 0
  %v176 = vsel %vm160, 1, 0
  %v177 = vsel %vm161, 1, 0
  %v178 = vsel %vm162, 1, 0
  %v179 = vsel %vm163, 1, 0
  %v180 = vsel %vm164, 1, 0
  %v181 = vsel %vm165, 1, 0
  %v182 = vsel %vm166, 1, 0
  %v183 = vsel %vm167, 1, 0
  %v184 = vsel %vm168, 1, 0
  %v185 = vsel %vm169, 1, 0
  %v186 = vsel %vm170, 1, 0
  %v187 = vsel %vm171, 1, 0
  %v188 = vsel %vm172, 1, 0
  %v189 = vcvt.s32.f32 %v173
  %v190 = vcvt.s32.f32 %v174
  %v191 = vcvt.s32.f32 %v175
  %v192 = vcvt.s32.f32 %v176
  %v193 = vcvt.s32.f32 %v177
  %v194 = vcvt.s32.f32 %v178
  %v195 = vcvt.s32.f32 %v179
  %v196 = vcvt.s32.f32 %v180
  %v197 = vcvt.s32.f32 %v181
  %v198 = vcvt.s32.f32 %v182
  %v199 = vcvt.s32.f32 %v183
  %v200 = vcvt.s32.f32 %v184
  %v201 = vcvt.s32.f32 %v185
  %v202 = vcvt.s32.f32 %v186
  %v203 = vcvt.s32.f32 %v187
  %v204 = vcvt.s32.f32 %v188
  %v205 = vlaneseq
  %v206 = vshrl.u32 %v205, 7
  %v207 = vadd.s32 %v206, 8
  %v208 = vadd.s32 %v206, 16
  %v209 = vadd.s32 %v206, 24
  %v210 = vadd.s32 %v206, 32
  %v211 = vadd.s32 %v206, 40
  %v212 = vadd.s32 %v206, 48
  %v213 = vadd.s32 %v206, 56
  %v214 = vadd.s32 %v206, 64
  %v215 = vadd.s32 %v206, 72
  %v216 = vadd.s32 %v206, 80
  %v217 = vadd.s32 %v206, 88
  %v218 = vadd.s32 %v206, 96
  %v219 = vadd.s32 %v206, 104
  %v220 = vadd.s32 %v206, 112
  %v221 = vadd.s32 %v206, 120
  %s222 = smul.u32 0, 128
  %v223 = vstv %s222
  %v224 = vadd.s32 %v206, %v223
  %v225 = vadd.s32 %v207, %v223
  %v226 = vadd.s32 %v208, %v223
  %v227 = vadd.s32 %v209, %v223
  %v228 = vadd.s32 %v210, %v223
  %v229 = vadd.s32 %v211, %v223
  %v230 = vadd.s32 %v212, %v223
  %v231 = vadd.s32 %v213, %v223
  %v232 = vadd.s32 %v214, %v223
  %v233 = vadd.s32 %v215, %v223
  %v234 = vadd.s32 %v216, %v223
  %v235 = vadd.s32 %v217, %v223
  %v236 = vadd.s32 %v218, %v223
  %v237 = vadd.s32 %v219, %v223
  %v238 = vadd.s32 %v220, %v223
  %v239 = vadd.s32 %v221, %v223
  %vm240 = vcmp.lt.s32.totalorder %v224, 128
  %vm241 = vcmp.lt.s32.totalorder %v225, 128
  %vm242 = vcmp.lt.s32.totalorder %v226, 128
  %vm243 = vcmp.lt.s32.totalorder %v227, 128
  %vm244 = vcmp.lt.s32.totalorder %v228, 128
  %vm245 = vcmp.lt.s32.totalorder %v229, 128
  %vm246 = vcmp.lt.s32.totalorder %v230, 128
  %vm247 = vcmp.lt.s32.totalorder %v231, 128
  %vm248 = vcmp.lt.s32.totalorder %v232, 128
  %vm249 = vcmp.lt.s32.totalorder %v233, 128
  %vm250 = vcmp.lt.s32.totalorder %v234, 128
  %vm251 = vcmp.lt.s32.totalorder %v235, 128
  %vm252 = vcmp.lt.s32.totalorder %v236, 128
  %vm253 = vcmp.lt.s32.totalorder %v237, 128
  %vm254 = vcmp.lt.s32.totalorder %v238, 128
  %vm255 = vcmp.lt.s32.totalorder %v239, 128
  %v256 = vsel %vm240, %v189, 0.0
  %v257 = vsel %vm241, %v190, 0.0
  %v258 = vsel %vm242, %v191, 0.0
  %v259 = vsel %vm243, %v192, 0.0
  %v260 = vsel %vm244, %v193, 0.0
  %v261 = vsel %vm245, %v194, 0.0
  %v262 = vsel %vm246, %v195, 0.0
  %v263 = vsel %vm247, %v196, 0.0
  %v264 = vsel %vm248, %v197, 0.0
  %v265 = vsel %vm249, %v198, 0.0
  %v266 = vsel %vm250, %v199, 0.0
  %v267 = vsel %vm251, %v200, 0.0
  %v268 = vsel %vm252, %v201, 0.0
  %v269 = vsel %vm253, %v202, 0.0
  %v270 = vsel %vm254, %v203, 0.0
  %v271 = vsel %vm255, %v204, 0.0
  %vm272 = vcmask 7168
  %273 = vst.msk [vmem:[%s1] sm:$0xff] %vm272, %v256
  %274 = vst.msk [vmem:[%s1 + $0x8] sm:$0xff] %vm272, %v257
  %275 = vst.msk [vmem:[%s1 + $0x10] sm:$0xff] %vm272, %v258
  %276 = vst.msk [vmem:[%s1 + $0x18] sm:$0xff] %vm272, %v259
  %277 = vst.msk [vmem:[%s1 + $0x20] sm:$0xff] %vm272, %v260
  %278 = vst.msk [vmem:[%s1 + $0x28] sm:$0xff] %vm272, %v261
  %279 = vst.msk [vmem:[%s1 + $0x30] sm:$0xff] %vm272, %v262
  %280 = vst.msk [vmem:[%s1 + $0x38] sm:$0xff] %vm272, %v263
  %281 = vst.msk [vmem:[%s1 + $0x40] sm:$0xff] %vm272, %v264
  %282 = vst.msk [vmem:[%s1 + $0x48] sm:$0xff] %vm272, %v265
  %283 = vst.msk [vmem:[%s1 + $0x50] sm:$0xff] %vm272, %v266
  %284 = vst.msk [vmem:[%s1 + $0x58] sm:$0xff] %vm272, %v267
  %285 = vst.msk [vmem:[%s1 + $0x60] sm:$0xff] %vm272, %v268
  %286 = vst.msk [vmem:[%s1 + $0x68] sm:$0xff] %vm272, %v269
  %287 = vst.msk [vmem:[%s1 + $0x70] sm:$0xff] %vm272, %v270
  %288 = vst.msk [vmem:[%s1 + $0x78] sm:$0xff] %vm272, %v271
  // Predicated region
  $region6: #{tpu_custom_call.1} parent=0 // pred_check
    _
  $region7: #{tpu_custom_call.1} parent=0 // pred_check_branch
    %290 = sbr.rel (0) target = $region9
  $region8: #{tpu_custom_call.1} parent=0 // pred_region
    _
  $region9: #{tpu_custom_call.1} parent=0 // pred_fallthru
    _
  // Predicated region
  $region10: #{tpu_custom_call.1} parent=0 // pred_check
    _
  $region11: #{tpu_custom_call.1} parent=0 // pred_check_branch
    %292 = sbr.rel (0) target = $region13
  $region12: #{tpu_custom_call.1} parent=0 // pred_region
    _
  $region13: #{tpu_custom_call.1} parent=0 // pred_fallthru
    _

</llo_original>
